<compile_context>
chip_gen: v7x
topology: tpu7x:2x2x1
jax: 0.10.0
libtpu: 0.0.40
codegen_flags: <defaults>
</compile_context>

<pallas_src>
import jax
import jax.numpy as jnp
from jax.experimental import pallas as pl
from jax.experimental.pallas import tpu as pltpu

LANE = 128


def _round_up(x, m):
    return ((x + m - 1) // m) * m


def _vmem_limit_bytes():
    """~3/4 of physical VMEM: ~96 MiB on v5e/v6e (128 MiB), ~48 MiB on v7x (64 MiB)."""
    try:
        cap = pltpu.get_tpu_info().vmem_capacity_bytes
    except Exception:
        return None
    return int(cap) * 3 // 4


# ----------------------------------------------------------------------------
# Pallas kernel: the full MLP hot path of NetstartModel.forward
# ----------------------------------------------------------------------------
def netstart_kernel(aa_ref, nt_ref, tax_ref,
                    waa_ref, wnt0_ref, wnt1_ref, w2_ref, wc_ref,
                    bias_ref, out_ref):
    f32 = jnp.float32
    bf16 = jnp.bfloat16

    biases = bias_ref[...]            # (8, 128) f32, packed rows
    b_aa = biases[0:1, :]
    b_nt0 = biases[1:2, :]
    b_nt1 = biases[2:3, :]            # pre-shifted to lanes [h_aa, h_aa+h_nt)
    b_2 = biases[3:4, :]
    b_c = biases[4:5, :]

    # hidden_aa = ReLU(aa_flat @ W_aa + b_aa)            (dropout_1 == identity)
    # Padded lanes have zero weights & bias -> relu -> exactly 0.
    h_aa = jnp.maximum(
        jnp.dot(aa_ref[...], waa_ref[...], preferred_element_type=f32) + b_aa,
        0.0)

    # nt tower: two Linear+ReLU layers                    (dropout_1 == identity)
    # Layer-1 weights/bias are pre-shifted so its real outputs land in lanes
    # [h_aa, h_aa+h_nt), disjoint from hidden_aa's lanes [0, h_aa).
    h_nt = jnp.maximum(
        jnp.dot(nt_ref[...], wnt0_ref[...], preferred_element_type=f32) + b_nt0,
        0.0)
    h_nt = jnp.maximum(
        jnp.dot(h_nt.astype(bf16), wnt1_ref[...], preferred_element_type=f32)
        + b_nt1, 0.0)

    # hidden = ReLU(concat([hidden_aa, hidden_nt, emb_tax]) @ W2 + b2)
    # The concat is two disjoint-lane VPU adds (aa | nt | tax occupy lanes
    # [0,h_aa) | [h_aa,h_aa+h_nt) | [h_aa+h_nt,+emb)), and W2 is a single
    # pre-packed (128,128) block -> one K=128 MXU pass instead of three.
    merged = (h_aa + h_nt).astype(bf16) + tax_ref[...]
    hidden = jnp.maximum(
        jnp.dot(merged, w2_ref[...], preferred_element_type=f32) + b_2,
        0.0)                                              # dropout_2 == identity

    # classifier -> lane-dense (TB, 128) store; real labels sliced outside.
    out_ref[...] = (jnp.dot(hidden.astype(bf16), wc_ref[...],
                            preferred_element_type=f32) + b_c)


def netstart_forward_pallas(aa_flat, nt_flat, emb_tax, params):
    """Run the fused NetstartModel MLP head in a single batched Pallas call."""
    kp, dims = params["kernel"], params["dims"]
    num_labels = params["num_labels"]
    B = aa_flat.shape[0]

    # Batch tiling: 16-aligned (bf16 sublane packing), up to 256 rows per tile.
    # When the batch is big enough, split into >= 2 tiles so v7x's two
    # TensorCores both get work via the "parallel" grid axis.
    if B >= 32:
        TB = min(256, _round_up((B + 1) // 2, 16))
    else:
        TB = _round_up(max(B, 1), 16)
    Bp = _round_up(B, TB)
    grid = (Bp // TB,)

    def pad_act(x, left, cols):
        x = x.astype(jnp.bfloat16)
        return jnp.pad(x, ((0, Bp - x.shape[0]),
                           (left, cols - left - x.shape[1])))

    aa_p = pad_act(aa_flat, 0, dims["aa_pad"])
    nt_p = pad_act(nt_flat, 0, dims["nt_pad"])
    # taxonomy embedding pre-placed at its merged-lane offset
    tax_p = pad_act(emb_tax, dims["tax_off"], dims["hp"])

    def batch_spec(cols):
        return pl.BlockSpec((TB, cols), lambda i: (i, 0))

    def const_spec(arr):
        # Constant-index blocks are never re-fetched across batch tiles:
        # single-buffer them to halve resident-weight VMEM.
        return pl.BlockSpec(arr.shape, lambda i: (0, 0),
                            pipeline_mode=pl.Buffered(1))

    operands = (aa_p, nt_p, tax_p,
                kp["waa"], kp["wnt0"], kp["wnt1"], kp["w2"], kp["wc"],
                kp["biases"])
    in_specs = [batch_spec(dims["aa_pad"]),
                batch_spec(dims["nt_pad"]),
                batch_spec(dims["hp"])]
    in_specs += [const_spec(a) for a in operands[3:]]

    compiler_kwargs = dict(dimension_semantics=("parallel",))
    vmem_limit = _vmem_limit_bytes()
    if vmem_limit is not None:
        compiler_kwargs["vmem_limit_bytes"] = vmem_limit

    out_padded = pl.pallas_call(
        netstart_kernel,
        out_shape=jax.ShapeDtypeStruct((Bp, dims["out_pad"]), jnp.float32),
        grid=grid,
        in_specs=in_specs,
        out_specs=batch_spec(dims["out_pad"]),
        compiler_params=pltpu.CompilerParams(**compiler_kwargs),
    )(*operands)

    return out_padded[:B, :num_labels]


# ----------------------------------------------------------------------------
# Deterministic parameter construction (synthetic, no checkpoint)
# ----------------------------------------------------------------------------
def make_params(key, *, aa_flat_dim, nt_dim, emb_size,
                h_aa, h_nt, h_merge, num_labels,
                vocab_sizes, esm_vocab, esm_hidden):
    keys = jax.random.split(key, 16)
    scale = 0.05

    def lin(k, din, dout):
        kw, kb = jax.random.split(k)
        w = scale * jax.random.normal(kw, (din, dout), jnp.float32)
        b = scale * jax.random.normal(kb, (1, dout), jnp.float32)
        return w, b

    waa, baa = lin(keys[0], aa_flat_dim, h_aa)
    wnt0, bnt0 = lin(keys[1], nt_dim, h_nt)
    wnt1, bnt1 = lin(keys[2], h_nt, h_nt)
    w2, b2 = lin(keys[3], h_aa + h_nt + emb_size, h_merge)
    wc, bc = lin(keys[4], h_merge, num_labels)

    # 7 taxonomy embedding tables, padding_idx=0 -> zero row
    tax_tables = []
    for i, vs in enumerate(vocab_sizes):
        t = scale * jax.random.normal(keys[5 + i], (vs, emb_size), jnp.float32)
        tax_tables.append(t.at[0].set(0.0))

    # Frozen stand-in for the pretrained ESM2 backbone (token embedding table).
    esm_table = scale * jax.random.normal(
        keys[12], (esm_vocab, esm_hidden), jnp.float32)

    # ---- padded, bf16 kernel-side parameters (lane-dense: 128 multiples) ----
    hp = LANE
    assert max(h_aa, h_nt, h_merge) <= hp, "hidden widths > 128 need K/N tiling"
    assert h_aa + h_nt + emb_size <= hp, \
        "merge concat > 128 lanes: fall back to the multi-block W2 path"
    assert num_labels <= hp, "num_labels > 128 needs N-tiling of the classifier"

    aa_pad = _round_up(aa_flat_dim, LANE)
    nt_pad = _round_up(nt_dim, LANE)
    out_pad = hp
    tax_off = h_aa + h_nt                 # merged-lane offset of emb_tax

    def place(x, rows, cols, r0=0, c0=0):
        out = jnp.zeros((rows, cols), jnp.float32)
        return out.at[r0:r0 + x.shape[0], c0:c0 + x.shape[1]].set(x)

    kernel_params = dict(
        waa=place(waa, aa_pad, hp).astype(jnp.bfloat16),
        wnt0=place(wnt0, nt_pad, hp).astype(jnp.bfloat16),
        # nt layer-1: real outputs shifted to lanes [h_aa, h_aa+h_nt)
        wnt1=place(wnt1, hp, hp, 0, h_aa).astype(jnp.bfloat16),
        # merged lanes are contiguous [aa | nt | tax], so W2's real rows map
        # 1:1 to rows [0, h_aa+h_nt+emb_size) of the packed (128,128) block.
        w2=place(w2, hp, hp).astype(jnp.bfloat16),
        wc=place(wc, hp, out_pad).astype(jnp.bfloat16),
        # packed bias rows: 0=aa, 1=nt0, 2=nt1(shifted), 3=merge, 4=classifier
        biases=jnp.concatenate([
            place(baa, 1, hp),
            place(bnt0, 1, hp),
            place(bnt1, 1, hp, 0, h_aa),
            place(b2, 1, hp),
            place(bc, 1, out_pad),
            jnp.zeros((3, hp), jnp.float32)], axis=0),
    )
    dims = dict(aa_pad=aa_pad, nt_pad=nt_pad, hp=hp,
                out_pad=out_pad, tax_off=tax_off)

    ref_params = dict(waa=waa, baa=baa, wnt0=wnt0, bnt0=bnt0,
                      wnt1=wnt1, bnt1=bnt1, w2=w2, b2=b2, wc=wc, bc=bc)

    return dict(kernel=kernel_params, ref=ref_params, dims=dims,
                tax_tables=tax_tables, esm_table=esm_table,
                num_labels=num_labels)


# ----------------------------------------------------------------------------
# Full forward (glue in plain JAX: embedding gathers + reshapes)
# ----------------------------------------------------------------------------
def _embed_inputs(x_aa, x_nt, attention_mask_aa, tax_ranks, params):
    B = x_aa.shape[0]
    # pretrained_model_aa stand-in -> last_hidden_state (B, aa_len, esm_hidden)
    seq_out_aa = (params["esm_table"][x_aa]
                  * attention_mask_aa[..., None].astype(jnp.float32))
    aa_flat = seq_out_aa.reshape(B, -1)
    nt_flat = x_nt.reshape(B, -1).astype(jnp.float32)
    emb_tax = jnp.zeros((B, params["tax_tables"][0].shape[1]), jnp.float32)
    for r in range(7):
        emb_tax = emb_tax + params["tax_tables"][r][tax_ranks[:, r]]
    return aa_flat, nt_flat, emb_tax


def netstart_forward(x_aa, x_nt, attention_mask_aa, tax_ranks, params):
    aa_flat, nt_flat, emb_tax = _embed_inputs(
        x_aa, x_nt, attention_mask_aa, tax_ranks, params)
    return netstart_forward_pallas(aa_flat, nt_flat, emb_tax, params)


def netstart_forward_ref(x_aa, x_nt, attention_mask_aa, tax_ranks, params):
    """Pure-JAX f32 reference of the same forward (for correctness check)."""
    p = params["ref"]
    aa_flat, nt_flat, emb_tax = _embed_inputs(
        x_aa, x_nt, attention_mask_aa, tax_ranks, params)
    h_aa = jax.nn.relu(aa_flat @ p["waa"] + p["baa"])
    h_nt = jax.nn.relu(nt_flat @ p["wnt0"] + p["bnt0"])
    h_nt = jax.nn.relu(h_nt @ p["wnt1"] + p["bnt1"])
    cat = jnp.concatenate([h_aa, h_nt, emb_tax], axis=1)
    hidden = jax.nn.relu(cat @ p["w2"] + p["b2"])
    return hidden @ p["wc"] + p["bc"]


if __name__ == "__main__":
    # small shapes consistent with the module
    B = 8
    aa_len = 8          # aa_encoding_length
    esm_hidden = 32     # pretrained_model_aa.config.hidden_size
    esm_vocab = 33
    nt_shape = (4, 16)  # flattened -> nt_encoding_length = 64
    nt_dim = nt_shape[0] * nt_shape[1]
    emb_size = 16
    h_aa, h_nt, h_merge = 32, 32, 32
    num_labels = 1
    vocab_sizes = [10, 10, 10, 10, 10, 10, 10]

    key = jax.random.PRNGKey(0)
    k_par, k_aa, k_nt, k_tax = jax.random.split(key, 4)

    params = make_params(
        k_par,
        aa_flat_dim=esm_hidden * aa_len, nt_dim=nt_dim, emb_size=emb_size,
        h_aa=h_aa, h_nt=h_nt, h_merge=h_merge, num_labels=num_labels,
        vocab_sizes=vocab_sizes, esm_vocab=esm_vocab, esm_hidden=esm_hidden)

    x_aa = jax.random.randint(k_aa, (B, aa_len), 0, esm_vocab, dtype=jnp.int32)
    x_nt = jax.random.normal(k_nt, (B,) + nt_shape, jnp.float32)
    attention_mask_aa = jnp.ones((B, aa_len), jnp.int32)
    tax_ranks = jax.random.randint(k_tax, (B, 7), 0, 10, dtype=jnp.int32)

    out = netstart_forward(x_aa, x_nt, attention_mask_aa, tax_ranks, params)
    out = jax.block_until_ready(out)
    assert out.shape == (B, num_labels)

    ref = netstart_forward_ref(x_aa, x_nt, attention_mask_aa, tax_ranks, params)
    max_err = float(jnp.max(jnp.abs(out - ref)))
    assert max_err < 5e-2, f"mismatch vs f32 reference: {max_err}"
    print("KERNEL_OK")
</pallas_src>

<mosaic_0001>
module attributes {stable_mosaic.version = 11 : i64} {
  func.func @netstart_kernel(%arg0: i32, %arg1: memref<16x256xbf16, #tpu.memory_space<vmem>>, %arg2: memref<16x128xbf16, #tpu.memory_space<vmem>>, %arg3: memref<16x128xbf16, #tpu.memory_space<vmem>>, %arg4: memref<256x128xbf16, #tpu.memory_space<vmem>>, %arg5: memref<128x128xbf16, #tpu.memory_space<vmem>>, %arg6: memref<128x128xbf16, #tpu.memory_space<vmem>>, %arg7: memref<128x128xbf16, #tpu.memory_space<vmem>>, %arg8: memref<128x128xbf16, #tpu.memory_space<vmem>>, %arg9: memref<8x128xf32, #tpu.memory_space<vmem>>, %arg10: memref<16x128xf32, #tpu.memory_space<vmem>>) attributes {dimension_semantics = [#tpu.dimension_semantics<parallel>], iteration_bounds = array<i64: 1>, scalar_prefetch = 0 : i64, scratch_operands = 0 : i64, tpu.core_type = #tpu.core_type<tc>, window_params = [{transform_indices = @transform_0, window_bounds = array<i64: 16, 256>}, {transform_indices = @transform_1, window_bounds = array<i64: 16, 128>}, {transform_indices = @transform_2, window_bounds = array<i64: 16, 128>}, {pipeline_mode = #tpu.pipeline_mode<synchronous>, transform_indices = @transform_3, window_bounds = array<i64: 256, 128>}, {pipeline_mode = #tpu.pipeline_mode<synchronous>, transform_indices = @transform_4, window_bounds = array<i64: 128, 128>}, {pipeline_mode = #tpu.pipeline_mode<synchronous>, transform_indices = @transform_5, window_bounds = array<i64: 128, 128>}, {pipeline_mode = #tpu.pipeline_mode<synchronous>, transform_indices = @transform_6, window_bounds = array<i64: 128, 128>}, {pipeline_mode = #tpu.pipeline_mode<synchronous>, transform_indices = @transform_7, window_bounds = array<i64: 128, 128>}, {pipeline_mode = #tpu.pipeline_mode<synchronous>, transform_indices = @transform_8, window_bounds = array<i64: 8, 128>}, {transform_indices = @transform_9, window_bounds = array<i64: 16, 128>}]} {
    %c0 = arith.constant 0 : index
    %c0_0 = arith.constant 0 : index
    %0 = vector.load %arg9[%c0, %c0_0] : memref<8x128xf32, #tpu.memory_space<vmem>>, vector<8x128xf32>
    %1 = vector.extract_strided_slice %0 {offsets = [0, 0], sizes = [1, 128], strides = [1, 1]} : vector<8x128xf32> to vector<1x128xf32>
    %2 = vector.extract_strided_slice %0 {offsets = [1, 0], sizes = [1, 128], strides = [1, 1]} : vector<8x128xf32> to vector<1x128xf32>
    %3 = vector.extract_strided_slice %0 {offsets = [2, 0], sizes = [1, 128], strides = [1, 1]} : vector<8x128xf32> to vector<1x128xf32>
    %4 = vector.extract_strided_slice %0 {offsets = [3, 0], sizes = [1, 128], strides = [1, 1]} : vector<8x128xf32> to vector<1x128xf32>
    %5 = vector.extract_strided_slice %0 {offsets = [4, 0], sizes = [1, 128], strides = [1, 1]} : vector<8x128xf32> to vector<1x128xf32>
    %c0_1 = arith.constant 0 : index
    %c0_2 = arith.constant 0 : index
    %6 = vector.load %arg1[%c0_1, %c0_2] : memref<16x256xbf16, #tpu.memory_space<vmem>>, vector<16x256xbf16>
    %c0_3 = arith.constant 0 : index
    %c0_4 = arith.constant 0 : index
    %7 = vector.load %arg4[%c0_3, %c0_4] : memref<256x128xbf16, #tpu.memory_space<vmem>>, vector<256x128xbf16>
    %cst = arith.constant dense<0.000000e+00> : vector<16x128xf32>
    %8 = tpu.matmul %6, %7, %cst {dimension_numbers = #tpu.dot_dimension_numbers<[1], [0], [0], [1], [0, 0, 1, 1], [], []>} : vector<16x256xbf16>, vector<256x128xbf16>, vector<16x128xf32> -> vector<16x128xf32>
    %9 = vector.broadcast %1 : vector<1x128xf32> to vector<16x128xf32>
    %10 = arith.addf %8, %9 : vector<16x128xf32>
    %cst_5 = arith.constant 0.000000e+00 : f32
    %11 = vector.broadcast %cst_5 : f32 to vector<16x128xf32>
    %12 = arith.maximumf %10, %11 : vector<16x128xf32>
    %c0_6 = arith.constant 0 : index
    %c0_7 = arith.constant 0 : index
    %13 = vector.load %arg2[%c0_6, %c0_7] : memref<16x128xbf16, #tpu.memory_space<vmem>>, vector<16x128xbf16>
    %c0_8 = arith.constant 0 : index
    %c0_9 = arith.constant 0 : index
    %14 = vector.load %arg5[%c0_8, %c0_9] : memref<128x128xbf16, #tpu.memory_space<vmem>>, vector<128x128xbf16>
    %cst_10 = arith.constant dense<0.000000e+00> : vector<16x128xf32>
    %15 = tpu.matmul %13, %14, %cst_10 {dimension_numbers = #tpu.dot_dimension_numbers<[1], [0], [0], [1], [0, 0, 1, 1], [], []>} : vector<16x128xbf16>, vector<128x128xbf16>, vector<16x128xf32> -> vector<16x128xf32>
    %16 = vector.broadcast %2 : vector<1x128xf32> to vector<16x128xf32>
    %17 = arith.addf %15, %16 : vector<16x128xf32>
    %cst_11 = arith.constant 0.000000e+00 : f32
    %18 = vector.broadcast %cst_11 : f32 to vector<16x128xf32>
    %19 = arith.maximumf %17, %18 : vector<16x128xf32>
    %20 = arith.truncf %19 : vector<16x128xf32> to vector<16x128xbf16>
    %c0_12 = arith.constant 0 : index
    %c0_13 = arith.constant 0 : index
    %21 = vector.load %arg6[%c0_12, %c0_13] : memref<128x128xbf16, #tpu.memory_space<vmem>>, vector<128x128xbf16>
    %cst_14 = arith.constant dense<0.000000e+00> : vector<16x128xf32>
    %22 = tpu.matmul %20, %21, %cst_14 {dimension_numbers = #tpu.dot_dimension_numbers<[1], [0], [0], [1], [0, 0, 1, 1], [], []>} : vector<16x128xbf16>, vector<128x128xbf16>, vector<16x128xf32> -> vector<16x128xf32>
    %23 = vector.broadcast %3 : vector<1x128xf32> to vector<16x128xf32>
    %24 = arith.addf %22, %23 : vector<16x128xf32>
    %cst_15 = arith.constant 0.000000e+00 : f32
    %25 = vector.broadcast %cst_15 : f32 to vector<16x128xf32>
    %26 = arith.maximumf %24, %25 : vector<16x128xf32>
    %27 = arith.addf %12, %26 : vector<16x128xf32>
    %28 = arith.truncf %27 : vector<16x128xf32> to vector<16x128xbf16>
    %c0_16 = arith.constant 0 : index
    %c0_17 = arith.constant 0 : index
    %29 = vector.load %arg3[%c0_16, %c0_17] : memref<16x128xbf16, #tpu.memory_space<vmem>>, vector<16x128xbf16>
    %30 = arith.addf %28, %29 : vector<16x128xbf16>
    %c0_18 = arith.constant 0 : index
    %c0_19 = arith.constant 0 : index
    %31 = vector.load %arg7[%c0_18, %c0_19] : memref<128x128xbf16, #tpu.memory_space<vmem>>, vector<128x128xbf16>
    %cst_20 = arith.constant dense<0.000000e+00> : vector<16x128xf32>
    %32 = tpu.matmul %30, %31, %cst_20 {dimension_numbers = #tpu.dot_dimension_numbers<[1], [0], [0], [1], [0, 0, 1, 1], [], []>} : vector<16x128xbf16>, vector<128x128xbf16>, vector<16x128xf32> -> vector<16x128xf32>
    %33 = vector.broadcast %4 : vector<1x128xf32> to vector<16x128xf32>
    %34 = arith.addf %32, %33 : vector<16x128xf32>
    %cst_21 = arith.constant 0.000000e+00 : f32
    %35 = vector.broadcast %cst_21 : f32 to vector<16x128xf32>
    %36 = arith.maximumf %34, %35 : vector<16x128xf32>
    %37 = arith.truncf %36 : vector<16x128xf32> to vector<16x128xbf16>
    %c0_22 = arith.constant 0 : index
    %c0_23 = arith.constant 0 : index
    %38 = vector.load %arg8[%c0_22, %c0_23] : memref<128x128xbf16, #tpu.memory_space<vmem>>, vector<128x128xbf16>
    %cst_24 = arith.constant dense<0.000000e+00> : vector<16x128xf32>
    %39 = tpu.matmul %37, %38, %cst_24 {dimension_numbers = #tpu.dot_dimension_numbers<[1], [0], [0], [1], [0, 0, 1, 1], [], []>} : vector<16x128xbf16>, vector<128x128xbf16>, vector<16x128xf32> -> vector<16x128xf32>
    %40 = vector.broadcast %5 : vector<1x128xf32> to vector<16x128xf32>
    %41 = arith.addf %39, %40 : vector<16x128xf32>
    %c0_25 = arith.constant 0 : index
    %c0_26 = arith.constant 0 : index
    %42 = vector.load %arg10[%c0_25, %c0_26] : memref<16x128xf32, #tpu.memory_space<vmem>>, vector<16x128xf32>
    tpu.vector_store %arg10[%c0_25, %c0_26], %41 {strides = array<i32>} : memref<16x128xf32, #tpu.memory_space<vmem>>, vector<16x128xf32>,
    return
  }
  func.func @transform_0(%arg0: i32) -> (i32, i32) {
    %c0_i32 = arith.constant 0 : i32
    %c0_i32_0 = arith.constant 0 : i32
    return %arg0, %c0_i32 : i32, i32
  }
  func.func @transform_1(%arg0: i32) -> (i32, i32) {
    %c0_i32 = arith.constant 0 : i32
    %c0_i32_0 = arith.constant 0 : i32
    return %arg0, %c0_i32 : i32, i32
  }
  func.func @transform_2(%arg0: i32) -> (i32, i32) {
    %c0_i32 = arith.constant 0 : i32
    %c0_i32_0 = arith.constant 0 : i32
    return %arg0, %c0_i32 : i32, i32
  }
  func.func @transform_3(%arg0: i32) -> (i32, i32) {
    %c0_i32 = arith.constant 0 : i32
    %c0_i32_0 = arith.constant 0 : i32
    %c0_i32_1 = arith.constant 0 : i32
    return %c0_i32, %c0_i32_0 : i32, i32
  }
  func.func @transform_4(%arg0: i32) -> (i32, i32) {
    %c0_i32 = arith.constant 0 : i32
    %c0_i32_0 = arith.constant 0 : i32
    %c0_i32_1 = arith.constant 0 : i32
    return %c0_i32, %c0_i32_0 : i32, i32
  }
  func.func @transform_5(%arg0: i32) -> (i32, i32) {
    %c0_i32 = arith.constant 0 : i32
    %c0_i32_0 = arith.constant 0 : i32
    %c0_i32_1 = arith.constant 0 : i32
    return %c0_i32, %c0_i32_0 : i32, i32
  }
  func.func @transform_6(%arg0: i32) -> (i32, i32) {
    %c0_i32 = arith.constant 0 : i32
    %c0_i32_0 = arith.constant 0 : i32
    %c0_i32_1 = arith.constant 0 : i32
    return %c0_i32, %c0_i32_0 : i32, i32
  }
  func.func @transform_7(%arg0: i32) -> (i32, i32) {
    %c0_i32 = arith.constant 0 : i32
    %c0_i32_0 = arith.constant 0 : i32
    %c0_i32_1 = arith.constant 0 : i32
    return %c0_i32, %c0_i32_0 : i32, i32
  }
  func.func @transform_8(%arg0: i32) -> (i32, i32) {
    %c0_i32 = arith.constant 0 : i32
    %c0_i32_0 = arith.constant 0 : i32
    %c0_i32_1 = arith.constant 0 : i32
    return %c0_i32, %c0_i32_0 : i32, i32
  }
  func.func @transform_9(%arg0: i32) -> (i32, i32) {
    %c0_i32 = arith.constant 0 : i32
    %c0_i32_0 = arith.constant 0 : i32
    return %arg0, %c0_i32 : i32, i32
  }
}

</mosaic_0001>

<llo_original>
// kernel: tpu_custom_call.1
$region0: #{tpu_custom_call.1}
  #allocation0 [shape = 'u32[]', space=smem, size = 0x4, offset = 0x4, fixed_abs, tag = 'smem constant byte address 0x4 - core index']
  #allocation1 [shape = 'u32[144,128]{1,0:T(1,128)}', space=vmem, size = 0x12000, scoped, tag = 'internal scratch']
  %s0 = inlined_call_operand.hbm [shape: bf16[16,256], index: 0, kind: input, shape index: {}]
  %s1 = inlined_call_operand.hbm [shape: bf16[16,128], index: 1, kind: input, shape index: {}]
  %s2 = inlined_call_operand.hbm [shape: bf16[16,128], index: 2, kind: input, shape index: {}]
  %s3 = inlined_call_operand.hbm [shape: bf16[256,128], index: 3, kind: input, shape index: {}]
  %s4 = inlined_call_operand.hbm [shape: bf16[128,128], index: 4, kind: input, shape index: {}]
  %s5 = inlined_call_operand.hbm [shape: bf16[128,128], index: 5, kind: input, shape index: {}]
  %s6 = inlined_call_operand.hbm [shape: bf16[128,128], index: 6, kind: input, shape index: {}]
  %s7 = inlined_call_operand.hbm [shape: bf16[128,128], index: 7, kind: input, shape index: {}]
  %s8 = inlined_call_operand.vmem [shape: f32[8,128], index: 8, kind: input, shape index: {}]
  %s9 = inlined_call_operand.hbm [shape: f32[16,128], index: 9, kind: output, shape index: {}]
  %s10 = sld [smem:[#allocation0]]
  $region78: #{tpu_custom_call.1} parent=0
    _
  %s12 = ssub.s32 1, %s10
  %s13 = scalar_select 0, %s12, %s10
  $region1: #{tpu_custom_call.1} parent=0
    #allocation2 [shape = 'u8[8192]{0}', space=vmem, size = 0x2000, scoped, tag = 'input window, operand 0, single buffered']
    #allocation3 [shape = 's32[1]{0}', space=sflag, size = 0x4, scoped, tag = 'scoped memory for tpu_custom_call.1']
    #allocation4 [shape = 's32[1]{0}', space=sflag, size = 0x4, scoped, tag = 'scoped memory for tpu_custom_call.1']
    #allocation5 [shape = 'u8[4096]{0}', space=vmem, size = 0x1000, scoped, tag = 'input window, operand 1, single buffered']
    #allocation6 [shape = 's32[1]{0}', space=sflag, size = 0x4, scoped, tag = 'scoped memory for tpu_custom_call.1']
    #allocation7 [shape = 'u8[4096]{0}', space=vmem, size = 0x1000, scoped, tag = 'input window, operand 2, single buffered']
    #allocation8 [shape = 'u8[65536]{0}', space=vmem, size = 0x10000, scoped, tag = 'input window, operand 3, single buffered']
    #allocation9 [shape = 's32[1]{0}', space=sflag, size = 0x4, scoped, tag = 'scoped memory for tpu_custom_call.1']
    #allocation10 [shape = 'u8[32768]{0}', space=vmem, size = 0x8000, scoped, tag = 'input window, operand 4, single buffered']
    #allocation11 [shape = 'u8[32768]{0}', space=vmem, size = 0x8000, scoped, tag = 'input window, operand 5, single buffered']
    #allocation12 [shape = 's32[1]{0}', space=sflag, size = 0x4, scoped, tag = 'scoped memory for tpu_custom_call.1']
    #allocation13 [shape = 'u8[32768]{0}', space=vmem, size = 0x8000, scoped, tag = 'input window, operand 6, single buffered']
    #allocation14 [shape = 'u8[32768]{0}', space=vmem, size = 0x8000, scoped, tag = 'input window, operand 7, single buffered']
    #allocation15 [shape = 's32[1]{0}', space=sflag, size = 0x4, scoped, tag = 'scoped memory for tpu_custom_call.1']
    #allocation16 [shape = 'u8[8192]{0}', space=vmem, size = 0x2000, scoped, tag = 'output window, operand 0, single buffered']
    %14 = vsyncpa [#allocation3], 0
    %15 = vsyncpa [#allocation6], 0
    %16 = vsyncpa [#allocation9], 0
    %17 = vsyncpa [#allocation12], 0
    %18 = vsyncpa [#allocation15], 0
    %19 = vsyncpa [#allocation4], 0
    // Predicated region
    $region2: #{tpu_custom_call.1} parent=1 // pred_check
      _
    $region3: #{tpu_custom_call.1} parent=1 // pred_check_branch
      %21 = sbr.rel (0) target = $region5
    $region4: #{tpu_custom_call.1} parent=1 // pred_region
      %s23 = ssub.s32 256, 256
      %24 = vsyncadd [#allocation3], %s23
      %s25 = sshll.u32 [#allocation2], 4
      %s26 = int_to_ptr.vmem [resolvable:$true] %s25
      %31 = dma.hbm_to_vmem [thread:$0]  %s0, 256, %s26, [#allocation3], 128, 128, 8
    $region5: #{tpu_custom_call.1} parent=1 // pred_fallthru
      _
    // Predicated region
    $region6: #{tpu_custom_call.1} parent=1 // pred_check
      _
    $region7: #{tpu_custom_call.1} parent=1 // pred_check_branch
      %33 = sbr.rel (0) target = $region9
    $region8: #{tpu_custom_call.1} parent=1 // pred_region
      %s35 = ssub.s32 128, 128
      %36 = vsyncadd [#allocation6], %s35
      %s37 = sshll.u32 [#allocation5], 4
      %s38 = int_to_ptr.vmem [resolvable:$true] %s37
      %43 = dma.hbm_to_vmem [thread:$0]  %s1, 128, %s38, [#allocation6], 64, 64, 4
    $region9: #{tpu_custom_call.1} parent=1 // pred_fallthru
      _
    // Predicated region
    $region10: #{tpu_custom_call.1} parent=1 // pred_check
      _
    $region11: #{tpu_custom_call.1} parent=1 // pred_check_branch
      %45 = sbr.rel (0) target = $region13
    $region12: #{tpu_custom_call.1} parent=1 // pred_region
      %s47 = ssub.s32 128, 128
      %48 = vsyncadd [#allocation6], %s47
      %s49 = sshll.u32 [#allocation7], 4
      %s50 = int_to_ptr.vmem [resolvable:$true] %s49
      %55 = dma.hbm_to_vmem [thread:$0]  %s2, 128, %s50, [#allocation6], 64, 64, 4
    $region13: #{tpu_custom_call.1} parent=1 // pred_fallthru
      _
    // Predicated region
    $region14: #{tpu_custom_call.1} parent=1 // pred_check
      _
    $region15: #{tpu_custom_call.1} parent=1 // pred_check_branch
      %57 = sbr.rel (0) target = $region17
    $region16: #{tpu_custom_call.1} parent=1 // pred_region
      %s59 = ssub.s32 2048, 2048
      %60 = vsyncadd [#allocation9], %s59
      %s61 = sshll.u32 [#allocation8], 4
      %s62 = int_to_ptr.vmem [resolvable:$true] %s61
      %67 = dma.hbm_to_vmem [thread:$0]  %s3, 2048, %s62, [#allocation9], 64, 64, 4
    $region17: #{tpu_custom_call.1} parent=1 // pred_fallthru
      _
    // Predicated region
    $region18: #{tpu_custom_call.1} parent=1 // pred_check
      _
    $region19: #{tpu_custom_call.1} parent=1 // pred_check_branch
      %69 = sbr.rel (0) target = $region21
    $region20: #{tpu_custom_call.1} parent=1 // pred_region
      %s71 = ssub.s32 1024, 1024
      %72 = vsyncadd [#allocation9], %s71
      %s73 = sshll.u32 [#allocation10], 4
      %s74 = int_to_ptr.vmem [resolvable:$true] %s73
      %79 = dma.hbm_to_vmem [thread:$0]  %s4, 1024, %s74, [#allocation9], 64, 64, 4
    $region21: #{tpu_custom_call.1} parent=1 // pred_fallthru
      _
    // Predicated region
    $region22: #{tpu_custom_call.1} parent=1 // pred_check
      _
    $region23: #{tpu_custom_call.1} parent=1 // pred_check_branch
      %81 = sbr.rel (0) target = $region25
    $region24: #{tpu_custom_call.1} parent=1 // pred_region
      %s83 = ssub.s32 1024, 1024
      %84 = vsyncadd [#allocation12], %s83
      %s85 = sshll.u32 [#allocation11], 4
      %s86 = int_to_ptr.vmem [resolvable:$true] %s85
      %91 = dma.hbm_to_vmem [thread:$0]  %s5, 1024, %s86, [#allocation12], 64, 64, 4
    $region25: #{tpu_custom_call.1} parent=1 // pred_fallthru
      _
    // Predicated region
    $region26: #{tpu_custom_call.1} parent=1 // pred_check
      _
    $region27: #{tpu_custom_call.1} parent=1 // pred_check_branch
      %93 = sbr.rel (0) target = $region29
    $region28: #{tpu_custom_call.1} parent=1 // pred_region
      %s95 = ssub.s32 1024, 1024
      %96 = vsyncadd [#allocation12], %s95
      %s97 = sshll.u32 [#allocation13], 4
      %s98 = int_to_ptr.vmem [resolvable:$true] %s97
      %103 = dma.hbm_to_vmem [thread:$0]  %s6, 1024, %s98, [#allocation12], 64, 64, 4
    $region29: #{tpu_custom_call.1} parent=1 // pred_fallthru
      _
    // Predicated region
    $region30: #{tpu_custom_call.1} parent=1 // pred_check
      _
    $region31: #{tpu_custom_call.1} parent=1 // pred_check_branch
      %105 = sbr.rel (0) target = $region33
    $region32: #{tpu_custom_call.1} parent=1 // pred_region
      %s107 = ssub.s32 1024, 1024
      %108 = vsyncadd [#allocation15], %s107
      %s109 = sshll.u32 [#allocation14], 4
      %s110 = int_to_ptr.vmem [resolvable:$true] %s109
      %115 = dma.hbm_to_vmem [thread:$0]  %s7, 1024, %s110, [#allocation15], 64, 64, 4
    $region33: #{tpu_custom_call.1} parent=1 // pred_fallthru
      _
    // Predicated region
    $region34: #{tpu_custom_call.1} parent=1 // pred_check
      _
    $region35: #{tpu_custom_call.1} parent=1 // pred_check_branch
      %117 = sbr.rel (0) target = $region37
    $region36: #{tpu_custom_call.1} parent=1 // pred_region
      _
    $region37: #{tpu_custom_call.1} parent=1 // pred_fallthru
      _
    // Predicated region
    $region38: #{tpu_custom_call.1} parent=1 // pred_check
      _
    $region39: #{tpu_custom_call.1} parent=1 // pred_check_branch
      %119 = sbr.rel (0) target = $region41
    $region40: #{tpu_custom_call.1} parent=1 // pred_region
      %120 = dma.done [#allocation3], 256
    $region41: #{tpu_custom_call.1} parent=1 // pred_fallthru
      _
    // Predicated region
    $region42: #{tpu_custom_call.1} parent=1 // pred_check
      _
    $region43: #{tpu_custom_call.1} parent=1 // pred_check_branch
      %122 = sbr.rel (0) target = $region45
    $region44: #{tpu_custom_call.1} parent=1 // pred_region
      %123 = dma.done [#allocation6], 128
    $region45: #{tpu_custom_call.1} parent=1 // pred_fallthru
      _
    // Predicated region
    $region46: #{tpu_custom_call.1} parent=1 // pred_check
      _
    $region47: #{tpu_custom_call.1} parent=1 // pred_check_branch
      %125 = sbr.rel (0) target = $region49
    $region48: #{tpu_custom_call.1} parent=1 // pred_region
      %126 = dma.done [#allocation6], 128
    $region49: #{tpu_custom_call.1} parent=1 // pred_fallthru
      _
    // Predicated region
    $region50: #{tpu_custom_call.1} parent=1 // pred_check
      _
    $region51: #{tpu_custom_call.1} parent=1 // pred_check_branch
      %128 = sbr.rel (0) target = $region53
    $region52: #{tpu_custom_call.1} parent=1 // pred_region
      %129 = dma.done [#allocation9], 2048
    $region53: #{tpu_custom_call.1} parent=1 // pred_fallthru
      _
    // Predicated region
    $region54: #{tpu_custom_call.1} parent=1 // pred_check
      _
    $region55: #{tpu_custom_call.1} parent=1 // pred_check_branch
      %131 = sbr.rel (0) target = $region57
    $region56: #{tpu_custom_call.1} parent=1 // pred_region
      %132 = dma.done [#allocation9], 1024
    $region57: #{tpu_custom_call.1} parent=1 // pred_fallthru
      _
    // Predicated region
    $region58: #{tpu_custom_call.1} parent=1 // pred_check
      _
    $region59: #{tpu_custom_call.1} parent=1 // pred_check_branch
      %134 = sbr.rel (0) target = $region61
    $region60: #{tpu_custom_call.1} parent=1 // pred_region
      %135 = dma.done [#allocation12], 1024
    $region61: #{tpu_custom_call.1} parent=1 // pred_fallthru
      _
    // Predicated region
    $region62: #{tpu_custom_call.1} parent=1 // pred_check
      _
    $region63: #{tpu_custom_call.1} parent=1 // pred_check_branch
      %137 = sbr.rel (0) target = $region65
    $region64: #{tpu_custom_call.1} parent=1 // pred_region
      %138 = dma.done [#allocation12], 1024
    $region65: #{tpu_custom_call.1} parent=1 // pred_fallthru
      _
    // Predicated region
    $region66: #{tpu_custom_call.1} parent=1 // pred_check
      _
    $region67: #{tpu_custom_call.1} parent=1 // pred_check_branch
      %140 = sbr.rel (0) target = $region69
    $region68: #{tpu_custom_call.1} parent=1 // pred_region
      %141 = dma.done [#allocation15], 1024
    $region69: #{tpu_custom_call.1} parent=1 // pred_fallthru
      _
    %v143 = vld [vmem:[%s8] sm:$0xff]
    %v144 = vld [vmem:[#allocation2] sm:$0xff]
    %v145 = vld [vmem:[#allocation2 + $0x8] sm:$0xff]
    %v146 = vld [vmem:[#allocation8] sm:$0xf]
    %v147 = vld [vmem:[#allocation8 + $0x4] sm:$0xf]
    %v148 = vld [vmem:[#allocation8 + $0x8] sm:$0xf]
    %v149 = vld [vmem:[#allocation8 + $0xc] sm:$0xf]
    %v150 = vld [vmem:[#allocation8 + $0x10] sm:$0xf]
    %v151 = vld [vmem:[#allocation8 + $0x14] sm:$0xf]
    %v152 = vld [vmem:[#allocation8 + $0x18] sm:$0xf]
    %v153 = vld [vmem:[#allocation8 + $0x1c] sm:$0xf]
    %v154 = vld [vmem:[#allocation8 + $0x20] sm:$0xf]
    %v155 = vld [vmem:[#allocation8 + $0x24] sm:$0xf]
    %v156 = vld [vmem:[#allocation8 + $0x28] sm:$0xf]
    %v157 = vld [vmem:[#allocation8 + $0x2c] sm:$0xf]
    %v158 = vld [vmem:[#allocation8 + $0x30] sm:$0xf]
    %v159 = vld [vmem:[#allocation8 + $0x34] sm:$0xf]
    %v160 = vld [vmem:[#allocation8 + $0x38] sm:$0xf]
    %v161 = vld [vmem:[#allocation8 + $0x3c] sm:$0xf]
    %v162 = vld [vmem:[#allocation8 + $0x40] sm:$0xf]
    %v163 = vld [vmem:[#allocation8 + $0x44] sm:$0xf]
    %v164 = vld [vmem:[#allocation8 + $0x48] sm:$0xf]
    %v165 = vld [vmem:[#allocation8 + $0x4c] sm:$0xf]
    %v166 = vld [vmem:[#allocation8 + $0x50] sm:$0xf]
    %v167 = vld [vmem:[#allocation8 + $0x54] sm:$0xf]
    %v168 = vld [vmem:[#allocation8 + $0x58] sm:$0xf]
    %v169 = vld [vmem:[#allocation8 + $0x5c] sm:$0xf]
    %v170 = vld [vmem:[#allocation8 + $0x60] sm:$0xf]
    %v171 = vld [vmem:[#allocation8 + $0x64] sm:$0xf]
    %v172 = vld [vmem:[#allocation8 + $0x68] sm:$0xf]
    %v173 = vld [vmem:[#allocation8 + $0x6c] sm:$0xf]
    %v174 = vld [vmem:[#allocation8 + $0x70] sm:$0xf]
    %v175 = vld [vmem:[#allocation8 + $0x74] sm:$0xf]
    %v176 = vld [vmem:[#allocation8 + $0x78] sm:$0xf]
    %v177 = vld [vmem:[#allocation8 + $0x7c] sm:$0xf]
    %v178 = vlaneseq
    %v179 = vshrl.u32 %v178, 7
    %v180 = vsub.s32 0, %v179
    %v181 = vrot.slane %v143, %v180
    %v184 = vunpack.c.l.b16 %v144
    %v185 = vunpack.c.h.b16 %v144
    %v186 = vunpack.c.l.b16 %v145
    %v187 = vunpack.c.h.b16 %v145
    %v188 = vpack.c.b16 %v186, %v184
    %v189 = vpack.c.b16 %v187, %v185
    %v224 = vunpack.c.l.b16 %v146
    %v225 = vunpack.c.l.b16 %v147
    %v226 = vunpack.c.l.b16 %v148
    %v227 = vunpack.c.l.b16 %v149
    %v228 = vunpack.c.l.b16 %v150
    %v229 = vunpack.c.l.b16 %v151
    %v230 = vunpack.c.l.b16 %v152
    %v231 = vunpack.c.l.b16 %v153
    %v232 = vunpack.c.l.b16 %v154
    %v233 = vunpack.c.l.b16 %v155
    %v234 = vunpack.c.l.b16 %v156
    %v235 = vunpack.c.l.b16 %v157
    %v236 = vunpack.c.l.b16 %v158
    %v237 = vunpack.c.l.b16 %v159
    %v238 = vunpack.c.l.b16 %v160
    %v239 = vunpack.c.l.b16 %v161
    %v240 = vunpack.c.l.b16 %v162
    %v241 = vunpack.c.l.b16 %v163
    %v242 = vunpack.c.l.b16 %v164
    %v243 = vunpack.c.l.b16 %v165
    %v244 = vunpack.c.l.b16 %v166
    %v245 = vunpack.c.l.b16 %v167
    %v246 = vunpack.c.l.b16 %v168
    %v247 = vunpack.c.l.b16 %v169
    %v248 = vunpack.c.l.b16 %v170
    %v249 = vunpack.c.l.b16 %v171
    %v250 = vunpack.c.l.b16 %v172
    %v251 = vunpack.c.l.b16 %v173
    %v252 = vunpack.c.l.b16 %v174
    %v253 = vunpack.c.l.b16 %v175
    %v254 = vunpack.c.l.b16 %v176
    %v255 = vunpack.c.l.b16 %v177
    %v256 = vpack.c.b16 %v225, %v224
    %v257 = vpack.c.b16 %v227, %v226
    %v258 = vpack.c.b16 %v229, %v228
    %v259 = vpack.c.b16 %v231, %v230
    %v260 = vpack.c.b16 %v233, %v232
    %v261 = vpack.c.b16 %v235, %v234
    %v262 = vpack.c.b16 %v237, %v236
    %v263 = vpack.c.b16 %v239, %v238
    %v264 = vpack.c.b16 %v241, %v240
    %v265 = vpack.c.b16 %v243, %v242
    %v266 = vpack.c.b16 %v245, %v244
    %v267 = vpack.c.b16 %v247, %v246
    %v268 = vpack.c.b16 %v249, %v248
    %v269 = vpack.c.b16 %v251, %v250
    %v270 = vpack.c.b16 %v253, %v252
    %v271 = vpack.c.b16 %v255, %v254
    %288 = vmatprep.subr.bf16.mxu0 0
    %289 = vmatpush1.bf16.msra.mxu0 %v256
    %290 = vmatprep.subr.bf16.mxu0 0
    %291 = vmatpush1.bf16.msra.mxu0 %v257
    %292 = vmatprep.subr.bf16.mxu0 0
    %293 = vmatpush1.bf16.msra.mxu0 %v258
    %294 = vmatprep.subr.bf16.mxu0 0
    %295 = vmatpush1.bf16.msra.mxu0 %v259
    %296 = vmatprep.subr.bf16.mxu0 0
    %297 = vmatpush1.bf16.msra.mxu0 %v260
    %298 = vmatprep.subr.bf16.mxu0 0
    %299 = vmatpush1.bf16.msra.mxu0 %v261
    %300 = vmatprep.subr.bf16.mxu0 0
    %301 = vmatpush1.bf16.msra.mxu0 %v262
    %302 = vmatprep.subr.bf16.mxu0 0
    %303 = vmatpush1.bf16.msra.mxu0 %v263
    %304 = vmatprep.subr.bf16.mxu0 0
    %305 = vmatpush1.bf16.msra.mxu0 %v264
    %306 = vmatprep.subr.bf16.mxu0 0
    %307 = vmatpush1.bf16.msra.mxu0 %v265
    %308 = vmatprep.subr.bf16.mxu0 0
    %309 = vmatpush1.bf16.msra.mxu0 %v266
    %310 = vmatprep.subr.bf16.mxu0 0
    %311 = vmatpush1.bf16.msra.mxu0 %v267
    %312 = vmatprep.subr.bf16.mxu0 0
    %313 = vmatpush1.bf16.msra.mxu0 %v268
    %314 = vmatprep.subr.bf16.mxu0 0
    %315 = vmatpush1.bf16.msra.mxu0 %v269
    %316 = vmatprep.subr.bf16.mxu0 0
    %317 = vmatpush1.bf16.msra.mxu0 %v270
    %318 = vmatprep.subr.bf16.mxu0 0
    %319 = vmatpush1.bf16.msra.mxu0 %v271
    %320 = vmatprep.mubr.bf16.mxu0 %v189
    %321 = vmatmul.mubr.bf16.gmra.mrb[0].mxu0 %v188
    %v322 = vpop.f32.mrb[0].mxu0
    %v323 = vadd.f32 %v181, %v322
    %v324 = vpop.f32.mrb[0].mxu0
    %v325 = vpop.f32.mrb[0].mxu0
    %v326 = vadd.f32 %v181, %v325
    %v327 = vpop.f32.mrb[0].mxu0
    %328 = vdwg.mxu0
    %v329 = vmax.f32 %v323, 0.0
    %v330 = vmax.f32 %v326, 0.0
    %v331 = vld [vmem:[#allocation5] sm:$0xf]
    %v332 = vld [vmem:[#allocation5 + $0x4] sm:$0xf]
    %v333 = vld [vmem:[#allocation10] sm:$0xf]
    %v334 = vld [vmem:[#allocation10 + $0x4] sm:$0xf]
    %v335 = vld [vmem:[#allocation10 + $0x8] sm:$0xf]
    %v336 = vld [vmem:[#allocation10 + $0xc] sm:$0xf]
    %v337 = vld [vmem:[#allocation10 + $0x10] sm:$0xf]
    %v338 = vld [vmem:[#allocation10 + $0x14] sm:$0xf]
    %v339 = vld [vmem:[#allocation10 + $0x18] sm:$0xf]
    %v340 = vld [vmem:[#allocation10 + $0x1c] sm:$0xf]
    %v341 = vld [vmem:[#allocation10 + $0x20] sm:$0xf]
    %v342 = vld [vmem:[#allocation10 + $0x24] sm:$0xf]
    %v343 = vld [vmem:[#allocation10 + $0x28] sm:$0xf]
    %v344 = vld [vmem:[#allocation10 + $0x2c] sm:$0xf]
    %v345 = vld [vmem:[#allocation10 + $0x30] sm:$0xf]
    %v346 = vld [vmem:[#allocation10 + $0x34] sm:$0xf]
    %v347 = vld [vmem:[#allocation10 + $0x38] sm:$0xf]
    %v348 = vld [vmem:[#allocation10 + $0x3c] sm:$0xf]
    %v349 = vlaneseq
    %v350 = vshrl.u32 %v349, 7
    %v351 = vsub.s32 1, %v350
    %v352 = vrot.slane %v143, %v351
    %v355 = vunpack.c.l.b16 %v331
    %v356 = vunpack.c.l.b16 %v332
    %v357 = vpack.c.b16 %v356, %v355
    %v375 = vunpack.c.l.b16 %v333
    %v376 = vunpack.c.l.b16 %v334
    %v377 = vunpack.c.l.b16 %v335
    %v378 = vunpack.c.l.b16 %v336
    %v379 = vunpack.c.l.b16 %v337
    %v380 = vunpack.c.l.b16 %v338
    %v381 = vunpack.c.l.b16 %v339
    %v382 = vunpack.c.l.b16 %v340
    %v383 = vunpack.c.l.b16 %v341
    %v384 = vunpack.c.l.b16 %v342
    %v385 = vunpack.c.l.b16 %v343
    %v386 = vunpack.c.l.b16 %v344
    %v387 = vunpack.c.l.b16 %v345
    %v388 = vunpack.c.l.b16 %v346
    %v389 = vunpack.c.l.b16 %v347
    %v390 = vunpack.c.l.b16 %v348
    %v391 = vpack.c.b16 %v376, %v375
    %v392 = vpack.c.b16 %v378, %v377
    %v393 = vpack.c.b16 %v380, %v379
    %v394 = vpack.c.b16 %v382, %v381
    %v395 = vpack.c.b16 %v384, %v383
    %v396 = vpack.c.b16 %v386, %v385
    %v397 = vpack.c.b16 %v388, %v387
    %v398 = vpack.c.b16 %v390, %v389
    %407 = vmatprep.subr.bf16.mxu0 0
    %408 = vmatpush1.bf16.msra.mxu0 %v391
    %409 = vmatprep.subr.bf16.mxu0 0
    %410 = vmatpush1.bf16.msra.mxu0 %v392
    %411 = vmatprep.subr.bf16.mxu0 0
    %412 = vmatpush1.bf16.msra.mxu0 %v393
    %413 = vmatprep.subr.bf16.mxu0 0
    %414 = vmatpush1.bf16.msra.mxu0 %v394
    %415 = vmatprep.subr.bf16.mxu0 0
    %416 = vmatpush1.bf16.msra.mxu0 %v395
    %417 = vmatprep.subr.bf16.mxu0 0
    %418 = vmatpush1.bf16.msra.mxu0 %v396
    %419 = vmatprep.subr.bf16.mxu0 0
    %420 = vmatpush1.bf16.msra.mxu0 %v397
    %421 = vmatprep.subr.bf16.mxu0 0
    %422 = vmatpush1.bf16.msra.mxu0 %v398
    %423 = vmatprep.subr.bf16.mxu0 0
    %424 = vmatpush1.bf16.msra.mxu0 0
    %425 = vmatprep.subr.bf16.mxu0 0
    %426 = vmatpush1.bf16.msra.mxu0 0
    %427 = vmatprep.subr.bf16.mxu0 0
    %428 = vmatpush1.bf16.msra.mxu0 0
    %429 = vmatprep.subr.bf16.mxu0 0
    %430 = vmatpush1.bf16.msra.mxu0 0
    %431 = vmatprep.subr.bf16.mxu0 0
    %432 = vmatpush1.bf16.msra.mxu0 0
    %433 = vmatprep.subr.bf16.mxu0 0
    %434 = vmatpush1.bf16.msra.mxu0 0
    %435 = vmatprep.subr.bf16.mxu0 0
    %436 = vmatpush1.bf16.msra.mxu0 0
    %437 = vmatprep.subr.bf16.mxu0 0
    %438 = vmatpush1.bf16.msra.mxu0 0
    %439 = vmatprep.mubr.bf16.mxu0 0
    %440 = vmatmul.mubr.bf16.gmra.mrb[0].mxu0 %v357
    %v441 = vpop.f32.mrb[0].mxu0
    %v442 = vadd.f32 %v352, %v441
    %v443 = vpop.f32.mrb[0].mxu0
    %v444 = vpop.f32.mrb[0].mxu0
    %v445 = vadd.f32 %v352, %v444
    %v446 = vpop.f32.mrb[0].mxu0
    %447 = vdwg.mxu0
    %v448 = vmax.f32 %v442, 0.0
    %v449 = vmax.f32 %v445, 0.0
    %v450 = vpack.c.bf16 %v449, %v448
    %v451 = vld [vmem:[#allocation11] sm:$0xf]
    %v452 = vld [vmem:[#allocation11 + $0x4] sm:$0xf]
    %v453 = vld [vmem:[#allocation11 + $0x8] sm:$0xf]
    %v454 = vld [vmem:[#allocation11 + $0xc] sm:$0xf]
    %v455 = vld [vmem:[#allocation11 + $0x10] sm:$0xf]
    %v456 = vld [vmem:[#allocation11 + $0x14] sm:$0xf]
    %v457 = vld [vmem:[#allocation11 + $0x18] sm:$0xf]
    %v458 = vld [vmem:[#allocation11 + $0x1c] sm:$0xf]
    %v459 = vld [vmem:[#allocation11 + $0x20] sm:$0xf]
    %v460 = vld [vmem:[#allocation11 + $0x24] sm:$0xf]
    %v461 = vld [vmem:[#allocation11 + $0x28] sm:$0xf]
    %v462 = vld [vmem:[#allocation11 + $0x2c] sm:$0xf]
    %v463 = vld [vmem:[#allocation11 + $0x30] sm:$0xf]
    %v464 = vld [vmem:[#allocation11 + $0x34] sm:$0xf]
    %v465 = vld [vmem:[#allocation11 + $0x38] sm:$0xf]
    %v466 = vld [vmem:[#allocation11 + $0x3c] sm:$0xf]
    %v467 = vlaneseq
    %v468 = vshrl.u32 %v467, 7
    %v469 = vsub.s32 2, %v468
    %v470 = vrot.slane %v143, %v469
    %v487 = vunpack.c.l.b16 %v451
    %v488 = vunpack.c.l.b16 %v452
    %v489 = vunpack.c.l.b16 %v453
    %v490 = vunpack.c.l.b16 %v454
    %v491 = vunpack.c.l.b16 %v455
    %v492 = vunpack.c.l.b16 %v456
    %v493 = vunpack.c.l.b16 %v457
    %v494 = vunpack.c.l.b16 %v458
    %v495 = vunpack.c.l.b16 %v459
    %v496 = vunpack.c.l.b16 %v460
    %v497 = vunpack.c.l.b16 %v461
    %v498 = vunpack.c.l.b16 %v462
    %v499 = vunpack.c.l.b16 %v463
    %v500 = vunpack.c.l.b16 %v464
    %v501 = vunpack.c.l.b16 %v465
    %v502 = vunpack.c.l.b16 %v466
    %v503 = vpack.c.b16 %v488, %v487
    %v504 = vpack.c.b16 %v490, %v489
    %v505 = vpack.c.b16 %v492, %v491
    %v506 = vpack.c.b16 %v494, %v493
    %v507 = vpack.c.b16 %v496, %v495
    %v508 = vpack.c.b16 %v498, %v497
    %v509 = vpack.c.b16 %v500, %v499
    %v510 = vpack.c.b16 %v502, %v501
    %519 = vmatprep.subr.bf16.mxu0 0
    %520 = vmatpush1.bf16.msra.mxu0 %v503
    %521 = vmatprep.subr.bf16.mxu0 0
    %522 = vmatpush1.bf16.msra.mxu0 %v504
    %523 = vmatprep.subr.bf16.mxu0 0
    %524 = vmatpush1.bf16.msra.mxu0 %v505
    %525 = vmatprep.subr.bf16.mxu0 0
    %526 = vmatpush1.bf16.msra.mxu0 %v506
    %527 = vmatprep.subr.bf16.mxu0 0
    %528 = vmatpush1.bf16.msra.mxu0 %v507
    %529 = vmatprep.subr.bf16.mxu0 0
    %530 = vmatpush1.bf16.msra.mxu0 %v508
    %531 = vmatprep.subr.bf16.mxu0 0
    %532 = vmatpush1.bf16.msra.mxu0 %v509
    %533 = vmatprep.subr.bf16.mxu0 0
    %534 = vmatpush1.bf16.msra.mxu0 %v510
    %535 = vmatprep.subr.bf16.mxu0 0
    %536 = vmatpush1.bf16.msra.mxu0 0
    %537 = vmatprep.subr.bf16.mxu0 0
    %538 = vmatpush1.bf16.msra.mxu0 0
    %539 = vmatprep.subr.bf16.mxu0 0
    %540 = vmatpush1.bf16.msra.mxu0 0
    %541 = vmatprep.subr.bf16.mxu0 0
    %542 = vmatpush1.bf16.msra.mxu0 0
    %543 = vmatprep.subr.bf16.mxu0 0
    %544 = vmatpush1.bf16.msra.mxu0 0
    %545 = vmatprep.subr.bf16.mxu0 0
    %546 = vmatpush1.bf16.msra.mxu0 0
    %547 = vmatprep.subr.bf16.mxu0 0
    %548 = vmatpush1.bf16.msra.mxu0 0
    %549 = vmatprep.subr.bf16.mxu0 0
    %550 = vmatpush1.bf16.msra.mxu0 0
    %551 = vmatprep.mubr.bf16.mxu0 0
    %552 = vmatmul.mubr.bf16.gmra.mrb[0].mxu0 %v450
    %v553 = vpop.f32.mrb[0].mxu0
    %v554 = vadd.f32 %v470, %v553
    %v555 = vpop.f32.mrb[0].mxu0
    %v556 = vpop.f32.mrb[0].mxu0
    %v557 = vadd.f32 %v470, %v556
    %v558 = vpop.f32.mrb[0].mxu0
    %559 = vdwg.mxu0
    %v560 = vmax.f32 %v554, 0.0
    %v561 = vmax.f32 %v557, 0.0
    %v562 = vadd.f32 %v329, %v560
    %v563 = vadd.f32 %v330, %v561
    %v564 = vpack.c.bf16 %v563, %v562
    %v565 = vld [vmem:[#allocation7] sm:$0xf]
    %v566 = vld [vmem:[#allocation7 + $0x4] sm:$0xf]
    %v569 = vunpack.c.l.b16 %v565
    %v570 = vunpack.c.l.b16 %v566
    %v571 = vpack.c.b16 %v570, %v569
    %v573 = vadd.bf16 %v564, %v571
    %v574 = vld [vmem:[#allocation13] sm:$0xf]
    %v575 = vld [vmem:[#allocation13 + $0x4] sm:$0xf]
    %v576 = vld [vmem:[#allocation13 + $0x8] sm:$0xf]
    %v577 = vld [vmem:[#allocation13 + $0xc] sm:$0xf]
    %v578 = vld [vmem:[#allocation13 + $0x10] sm:$0xf]
    %v579 = vld [vmem:[#allocation13 + $0x14] sm:$0xf]
    %v580 = vld [vmem:[#allocation13 + $0x18] sm:$0xf]
    %v581 = vld [vmem:[#allocation13 + $0x1c] sm:$0xf]
    %v582 = vld [vmem:[#allocation13 + $0x20] sm:$0xf]
    %v583 = vld [vmem:[#allocation13 + $0x24] sm:$0xf]
    %v584 = vld [vmem:[#allocation13 + $0x28] sm:$0xf]
    %v585 = vld [vmem:[#allocation13 + $0x2c] sm:$0xf]
    %v586 = vld [vmem:[#allocation13 + $0x30] sm:$0xf]
    %v587 = vld [vmem:[#allocation13 + $0x34] sm:$0xf]
    %v588 = vld [vmem:[#allocation13 + $0x38] sm:$0xf]
    %v589 = vld [vmem:[#allocation13 + $0x3c] sm:$0xf]
    %v590 = vlaneseq
    %v591 = vshrl.u32 %v590, 7
    %v592 = vsub.s32 3, %v591
    %v593 = vrot.slane %v143, %v592
    %v610 = vunpack.c.l.b16 %v574
    %v611 = vunpack.c.l.b16 %v575
    %v612 = vunpack.c.l.b16 %v576
    %v613 = vunpack.c.l.b16 %v577
    %v614 = vunpack.c.l.b16 %v578
    %v615 = vunpack.c.l.b16 %v579
    %v616 = vunpack.c.l.b16 %v580
    %v617 = vunpack.c.l.b16 %v581
    %v618 = vunpack.c.l.b16 %v582
    %v619 = vunpack.c.l.b16 %v583
    %v620 = vunpack.c.l.b16 %v584
    %v621 = vunpack.c.l.b16 %v585
    %v622 = vunpack.c.l.b16 %v586
    %v623 = vunpack.c.l.b16 %v587
    %v624 = vunpack.c.l.b16 %v588
    %v625 = vunpack.c.l.b16 %v589
    %v626 = vpack.c.b16 %v611, %v610
    %v627 = vpack.c.b16 %v613, %v612
    %v628 = vpack.c.b16 %v615, %v614
    %v629 = vpack.c.b16 %v617, %v616
    %v630 = vpack.c.b16 %v619, %v618
    %v631 = vpack.c.b16 %v621, %v620
    %v632 = vpack.c.b16 %v623, %v622
    %v633 = vpack.c.b16 %v625, %v624
    %642 = vmatprep.subr.bf16.mxu0 0
    %643 = vmatpush1.bf16.msra.mxu0 %v626
    %644 = vmatprep.subr.bf16.mxu0 0
    %645 = vmatpush1.bf16.msra.mxu0 %v627
    %646 = vmatprep.subr.bf16.mxu0 0
    %647 = vmatpush1.bf16.msra.mxu0 %v628
    %648 = vmatprep.subr.bf16.mxu0 0
    %649 = vmatpush1.bf16.msra.mxu0 %v629
    %650 = vmatprep.subr.bf16.mxu0 0
    %651 = vmatpush1.bf16.msra.mxu0 %v630
    %652 = vmatprep.subr.bf16.mxu0 0
    %653 = vmatpush1.bf16.msra.mxu0 %v631
    %654 = vmatprep.subr.bf16.mxu0 0
    %655 = vmatpush1.bf16.msra.mxu0 %v632
    %656 = vmatprep.subr.bf16.mxu0 0
    %657 = vmatpush1.bf16.msra.mxu0 %v633
    %658 = vmatprep.subr.bf16.mxu0 0
    %659 = vmatpush1.bf16.msra.mxu0 0
    %660 = vmatprep.subr.bf16.mxu0 0
    %661 = vmatpush1.bf16.msra.mxu0 0
    %662 = vmatprep.subr.bf16.mxu0 0
    %663 = vmatpush1.bf16.msra.mxu0 0
    %664 = vmatprep.subr.bf16.mxu0 0
    %665 = vmatpush1.bf16.msra.mxu0 0
    %666 = vmatprep.subr.bf16.mxu0 0
    %667 = vmatpush1.bf16.msra.mxu0 0
    %668 = vmatprep.subr.bf16.mxu0 0
    %669 = vmatpush1.bf16.msra.mxu0 0
    %670 = vmatprep.subr.bf16.mxu0 0
    %671 = vmatpush1.bf16.msra.mxu0 0
    %672 = vmatprep.subr.bf16.mxu0 0
    %673 = vmatpush1.bf16.msra.mxu0 0
    %674 = vmatprep.mubr.bf16.mxu0 0
    %675 = vmatmul.mubr.bf16.gmra.mrb[0].mxu0 %v573
    %v676 = vpop.f32.mrb[0].mxu0
    %v677 = vadd.f32 %v593, %v676
    %v678 = vpop.f32.mrb[0].mxu0
    %v679 = vpop.f32.mrb[0].mxu0
    %v680 = vadd.f32 %v593, %v679
    %v681 = vpop.f32.mrb[0].mxu0
    %682 = vdwg.mxu0
    %v683 = vmax.f32 %v677, 0.0
    %v684 = vmax.f32 %v680, 0.0
    %v685 = vpack.c.bf16 %v684, %v683
    %v686 = vld [vmem:[#allocation14] sm:$0xf]
    %v687 = vld [vmem:[#allocation14 + $0x4] sm:$0xf]
    %v688 = vld [vmem:[#allocation14 + $0x8] sm:$0xf]
    %v689 = vld [vmem:[#allocation14 + $0xc] sm:$0xf]
    %v690 = vld [vmem:[#allocation14 + $0x10] sm:$0xf]
    %v691 = vld [vmem:[#allocation14 + $0x14] sm:$0xf]
    %v692 = vld [vmem:[#allocation14 + $0x18] sm:$0xf]
    %v693 = vld [vmem:[#allocation14 + $0x1c] sm:$0xf]
    %v694 = vld [vmem:[#allocation14 + $0x20] sm:$0xf]
    %v695 = vld [vmem:[#allocation14 + $0x24] sm:$0xf]
    %v696 = vld [vmem:[#allocation14 + $0x28] sm:$0xf]
    %v697 = vld [vmem:[#allocation14 + $0x2c] sm:$0xf]
    %v698 = vld [vmem:[#allocation14 + $0x30] sm:$0xf]
    %v699 = vld [vmem:[#allocation14 + $0x34] sm:$0xf]
    %v700 = vld [vmem:[#allocation14 + $0x38] sm:$0xf]
    %v701 = vld [vmem:[#allocation14 + $0x3c] sm:$0xf]
    %v702 = vlaneseq
    %v703 = vshrl.u32 %v702, 7
    %v704 = vsub.s32 4, %v703
    %v705 = vrot.slane %v143, %v704
    %v722 = vunpack.c.l.b16 %v686
    %v723 = vunpack.c.l.b16 %v687
    %v724 = vunpack.c.l.b16 %v688
    %v725 = vunpack.c.l.b16 %v689
    %v726 = vunpack.c.l.b16 %v690
    %v727 = vunpack.c.l.b16 %v691
    %v728 = vunpack.c.l.b16 %v692
    %v729 = vunpack.c.l.b16 %v693
    %v730 = vunpack.c.l.b16 %v694
    %v731 = vunpack.c.l.b16 %v695
    %v732 = vunpack.c.l.b16 %v696
    %v733 = vunpack.c.l.b16 %v697
    %v734 = vunpack.c.l.b16 %v698
    %v735 = vunpack.c.l.b16 %v699
    %v736 = vunpack.c.l.b16 %v700
    %v737 = vunpack.c.l.b16 %v701
    %v738 = vpack.c.b16 %v723, %v722
    %v739 = vpack.c.b16 %v725, %v724
    %v740 = vpack.c.b16 %v727, %v726
    %v741 = vpack.c.b16 %v729, %v728
    %v742 = vpack.c.b16 %v731, %v730
    %v743 = vpack.c.b16 %v733, %v732
    %v744 = vpack.c.b16 %v735, %v734
    %v745 = vpack.c.b16 %v737, %v736
    %754 = vmatprep.subr.bf16.mxu0 0
    %755 = vmatpush1.bf16.msra.mxu0 %v738
    %756 = vmatprep.subr.bf16.mxu0 0
    %757 = vmatpush1.bf16.msra.mxu0 %v739
    %758 = vmatprep.subr.bf16.mxu0 0
    %759 = vmatpush1.bf16.msra.mxu0 %v740
    %760 = vmatprep.subr.bf16.mxu0 0
    %761 = vmatpush1.bf16.msra.mxu0 %v741
    %762 = vmatprep.subr.bf16.mxu0 0
    %763 = vmatpush1.bf16.msra.mxu0 %v742
    %764 = vmatprep.subr.bf16.mxu0 0
    %765 = vmatpush1.bf16.msra.mxu0 %v743
    %766 = vmatprep.subr.bf16.mxu0 0
    %767 = vmatpush1.bf16.msra.mxu0 %v744
    %768 = vmatprep.subr.bf16.mxu0 0
    %769 = vmatpush1.bf16.msra.mxu0 %v745
    %770 = vmatprep.subr.bf16.mxu0 0
    %771 = vmatpush1.bf16.msra.mxu0 0
    %772 = vmatprep.subr.bf16.mxu0 0
    %773 = vmatpush1.bf16.msra.mxu0 0
    %774 = vmatprep.subr.bf16.mxu0 0
    %775 = vmatpush1.bf16.msra.mxu0 0
    %776 = vmatprep.subr.bf16.mxu0 0
    %777 = vmatpush1.bf16.msra.mxu0 0
    %778 = vmatprep.subr.bf16.mxu0 0
    %779 = vmatpush1.bf16.msra.mxu0 0
    %780 = vmatprep.subr.bf16.mxu0 0
    %781 = vmatpush1.bf16.msra.mxu0 0
    %782 = vmatprep.subr.bf16.mxu0 0
    %783 = vmatpush1.bf16.msra.mxu0 0
    %784 = vmatprep.subr.bf16.mxu0 0
    %785 = vmatpush1.bf16.msra.mxu0 0
    %786 = vmatprep.mubr.bf16.mxu0 0
    %787 = vmatmul.mubr.bf16.gmra.mrb[0].mxu0 %v685
    %v788 = vpop.f32.mrb[0].mxu0
    %v789 = vadd.f32 %v705, %v788
    %v790 = vpop.f32.mrb[0].mxu0
    %v791 = vpop.f32.mrb[0].mxu0
    %v792 = vadd.f32 %v705, %v791
    %v793 = vpop.f32.mrb[0].mxu0
    %794 = vdwg.mxu0
    %795 = vst [vmem:[#allocation16] sm:$0xff] %v789
    %796 = vst [vmem:[#allocation16 + $0x8] sm:$0xff] %v792
    // Predicated region
    $region70: #{tpu_custom_call.1} parent=1 // pred_check
      _
    $region71: #{tpu_custom_call.1} parent=1 // pred_check_branch
      %798 = sbr.rel (0) target = $region73
    $region72: #{tpu_custom_call.1} parent=1 // pred_region
      %s800 = ssub.s32 256, 256
      %801 = vsyncadd [#allocation4], %s800
      %s802 = sshll.u32 [#allocation16], 4
      %s803 = int_to_ptr.vmem [resolvable:$true] %s802
      %808 = dma.vmem_to_hbm [thread:$0]  %s803, 256, %s9, [#allocation4], 128, 128, 8
    $region73: #{tpu_custom_call.1} parent=1 // pred_fallthru
      _
    // Predicated region
    $region74: #{tpu_custom_call.1} parent=1 // pred_check
      _
    $region75: #{tpu_custom_call.1} parent=1 // pred_check_branch
      %810 = sbr.rel (0) target = $region77
    $region76: #{tpu_custom_call.1} parent=1 // pred_region
      %811 = dma.done [#allocation4], 256
    $region77: #{tpu_custom_call.1} parent=1 // pred_fallthru
      _
    %812 = vsyncpa [#allocation3], 1
    %813 = vsyncpa [#allocation6], 1
    %814 = vsyncpa [#allocation9], 1
    %815 = vsyncpa [#allocation12], 1
    %816 = vsyncpa [#allocation15], 1
    %817 = vsyncpa [#allocation4], 1

</llo_original>
